<compile_context>
chip_gen: v5e
topology: v5e:2x2
jax: 0.10.0
libtpu: 0.0.40
codegen_flags: <defaults>
</compile_context>

<pallas_src>
import functools

import jax
import jax.numpy as jnp
from jax.experimental import pallas as pl
from jax.experimental.pallas import tpu as pltpu


def _conv_matmul_kernel(p_ref, w_ref, b_ref, o_ref):
    """One output tile = full-K MXU contraction + bias epilogue.

    p_ref: (K, TL)     bf16 im2col patches (K = KH*KW*Cin), TL lane-dense
    w_ref: (Cout, K)   bf16 folded conv weights
    b_ref: (Cout, 1)   f32 bias
    o_ref: (Cout, TL)  output tile (lane-dense, unmasked stores)
    """
    acc = jnp.dot(w_ref[...], p_ref[...], preferred_element_type=jnp.float32)
    o_ref[...] = (acc + b_ref[...]).astype(o_ref.dtype)


def _round_up(x, m):
    return (x + m - 1) // m * m


@functools.partial(jax.jit, static_argnames=("kernel_size", "stride", "upsample"))
def upsample_conv_layer(x_nchw, weight_oihw, bias, *, kernel_size, stride,
                        upsample=None):
    """Pallas implementation of UpSampleConvLayer.forward.

    x_nchw:      (N, Cin, H, W)
    weight_oihw: (Cout, Cin, KH, KW)   (PyTorch Conv2d layout)
    bias:        (Cout,)
    """
    del upsample  # Dead in the reference forward: it pads/convs the ORIGINAL x.

    n, cin, h, w = x_nchw.shape
    cout = weight_oihw.shape[0]
    kh = kw = kernel_size
    pad = kernel_size // 2
    if h <= pad or w <= pad:
        raise ValueError("ReflectionPad2d requires H > pad and W > pad "
                         f"(got H={h}, W={w}, pad={pad})")

    # Reflection pad, channel-first (no layout transposes anywhere).
    x_pad = jnp.pad(x_nchw, ((0, 0), (0, 0), (pad, pad), (pad, pad)),
                    mode="reflect")
    hp, wp = h + 2 * pad, w + 2 * pad
    ho = (hp - kh) // stride + 1
    wo = (wp - kw) // stride + 1

    # --- im2col in the (jit-fused) wrapper: spatial-last => lane-dense. ------
    taps = []
    for ikh in range(kh):
        for ikw in range(kw):
            taps.append(jax.lax.slice(
                x_pad,
                (0, 0, ikh, ikw),
                (n, cin, ikh + (ho - 1) * stride + 1,
                 ikw + (wo - 1) * stride + 1),
                (1, 1, stride, stride)))              # (N, Cin, Ho, Wo)
    k_feat = kh * kw * cin
    l_spatial = ho * wo
    patches = jnp.stack(taps, axis=1).reshape(n, k_feat, l_spatial)
    patches = patches.astype(jnp.bfloat16)            # bf16 operands, f32 accum

    # Spatial tiling: tiles are multiples of 128 lanes; zero-pad the tail
    # (padded columns only ever produce bias values, sliced off below).
    tl = 512 if l_spatial >= 512 else _round_up(l_spatial, 128)
    lp = _round_up(l_spatial, tl)
    if lp != l_spatial:
        patches = jnp.pad(patches, ((0, 0), (0, 0), (0, lp - l_spatial)))

    # Fold the 3x3xCin taps into one (Cout, 36) weight matrix matching the
    # patch feature order (kh, kw, ci).
    wmat = jnp.transpose(weight_oihw, (0, 2, 3, 1)).reshape(cout, k_feat)
    wmat = wmat.astype(jnp.bfloat16)
    b2 = bias.reshape(cout, 1).astype(jnp.float32)

    # Per-step VMEM (double-buffered): 2*(K*TL*2B) + 2*(Cout*TL*4B) + weights
    # ~= 110 KiB at TL=512 -- far below the 32 MiB scoped limit on all of
    # v5e / v6e / v7x.
    grid = (n, lp // tl)
    out_flat = pl.pallas_call(
        _conv_matmul_kernel,
        out_shape=jax.ShapeDtypeStruct((n, cout, lp), jnp.float32),
        grid=grid,
        in_specs=[
            pl.BlockSpec((None, k_feat, tl), lambda ni, li: (ni, 0, li)),
            pl.BlockSpec((cout, k_feat), lambda ni, li: (0, 0)),
            pl.BlockSpec((cout, 1), lambda ni, li: (0, 0)),
        ],
        out_specs=pl.BlockSpec((None, cout, tl), lambda ni, li: (ni, 0, li)),
        compiler_params=pltpu.CompilerParams(
            dimension_semantics=("parallel", "parallel"),
            vmem_limit_bytes=32 * 1024 * 1024,
        ),
    )(patches, wmat, b2)

    out = out_flat[:, :, :l_spatial].reshape(n, cout, ho, wo)
    return out.astype(x_nchw.dtype)                    # already NCHW


def _reference(x_nchw, weight_oihw, bias, *, kernel_size, stride):
    pad = kernel_size // 2
    x_pad = jnp.pad(x_nchw, ((0, 0), (0, 0), (pad, pad), (pad, pad)),
                    mode="reflect")
    out = jax.lax.conv_general_dilated(
        x_pad, weight_oihw, window_strides=(stride, stride), padding="VALID",
        dimension_numbers=("NCHW", "OIHW", "NCHW"),
        precision=jax.lax.Precision.HIGHEST)
    return out + bias.reshape(1, -1, 1, 1)


if __name__ == "__main__":
    # Module config (kept small): in_channels=4, out_channels=8, k=3, stride=1,
    # upsample=2 (no effect on the output -- see note at top).
    in_channels, out_channels, kernel_size, stride = 4, 8, 3, 1
    N, H, W = 2, 16, 16

    key = jax.random.PRNGKey(0)
    kx, kw_, kb = jax.random.split(key, 3)
    x = jax.random.normal(kx, (N, in_channels, H, W), dtype=jnp.float32)
    weight = 0.1 * jax.random.normal(
        kw_, (out_channels, in_channels, kernel_size, kernel_size),
        dtype=jnp.float32)
    bias = 0.1 * jax.random.normal(kb, (out_channels,), dtype=jnp.float32)

    # Round x / weight to bf16-representable values so the kernel's bf16
    # operand cast is exact and the check against the f32 reference is tight.
    x = x.astype(jnp.bfloat16).astype(jnp.float32)
    weight = weight.astype(jnp.bfloat16).astype(jnp.float32)

    out = upsample_conv_layer(x, weight, bias, kernel_size=kernel_size,
                              stride=stride, upsample=2)
    out = jax.block_until_ready(out)

    ref = _reference(x, weight, bias, kernel_size=kernel_size, stride=stride)
    assert out.shape == ref.shape, (out.shape, ref.shape)
    assert jnp.allclose(out, ref, atol=2e-3, rtol=2e-3), \
        float(jnp.max(jnp.abs(out - ref)))

    print("KERNEL_OK")
</pallas_src>

<mosaic_0001>
module attributes {stable_mosaic.version = 11 : i64} {
  func.func @_conv_matmul_kernel(%arg0: i32, %arg1: i32, %arg2: memref<1x36x256xbf16, #tpu.memory_space<vmem>>, %arg3: memref<8x36xbf16, #tpu.memory_space<vmem>>, %arg4: memref<8x1xf32, #tpu.memory_space<vmem>>, %arg5: memref<1x8x256xf32, #tpu.memory_space<vmem>>) attributes {dimension_semantics = [#tpu.dimension_semantics<parallel>, #tpu.dimension_semantics<parallel>], iteration_bounds = array<i64: 2, 1>, scalar_prefetch = 0 : i64, scratch_operands = 0 : i64, tpu.core_type = #tpu.core_type<tc>, window_params = [{transform_indices = @transform_0, window_bounds = array<i64: 1, 36, 256>}, {pipeline_mode = #tpu.pipeline_mode<synchronous>, transform_indices = @transform_1, window_bounds = array<i64: 8, 36>}, {pipeline_mode = #tpu.pipeline_mode<synchronous>, transform_indices = @transform_2, window_bounds = array<i64: 8, 1>}, {transform_indices = @transform_3, window_bounds = array<i64: 1, 8, 256>}]} {
    %c0 = arith.constant 0 : index
    %c0_0 = arith.constant 0 : index
    %0 = vector.load %arg3[%c0, %c0_0] : memref<8x36xbf16, #tpu.memory_space<vmem>>, vector<8x36xbf16>
    %c0_1 = arith.constant 0 : index
    %c0_2 = arith.constant 0 : index
    %c0_3 = arith.constant 0 : index
    %1 = vector.load %arg2[%c0_1, %c0_2, %c0_3] : memref<1x36x256xbf16, #tpu.memory_space<vmem>>, vector<1x36x256xbf16>
    %2 = vector.shape_cast %1 : vector<1x36x256xbf16> to vector<36x256xbf16>
    %cst = arith.constant dense<0.000000e+00> : vector<8x256xf32>
    %3 = tpu.matmul %0, %2, %cst {dimension_numbers = #tpu.dot_dimension_numbers<[1], [0], [0], [1], [0, 0, 1, 1], [], []>} : vector<8x36xbf16>, vector<36x256xbf16>, vector<8x256xf32> -> vector<8x256xf32>
    %c0_4 = arith.constant 0 : index
    %c0_5 = arith.constant 0 : index
    %4 = vector.load %arg4[%c0_4, %c0_5] : memref<8x1xf32, #tpu.memory_space<vmem>>, vector<8x1xf32>
    %5 = vector.broadcast %4 : vector<8x1xf32> to vector<8x256xf32>
    %6 = arith.addf %3, %5 : vector<8x256xf32>
    %c0_6 = arith.constant 0 : index
    %c0_7 = arith.constant 0 : index
    %c0_8 = arith.constant 0 : index
    %7 = vector.load %arg5[%c0_6, %c0_7, %c0_8] : memref<1x8x256xf32, #tpu.memory_space<vmem>>, vector<1x8x256xf32>
    %8 = vector.shape_cast %7 : vector<1x8x256xf32> to vector<8x256xf32>
    %9 = vector.shape_cast %6 : vector<8x256xf32> to vector<1x8x256xf32>
    tpu.vector_store %arg5[%c0_6, %c0_7, %c0_8], %9 {strides = array<i32>} : memref<1x8x256xf32, #tpu.memory_space<vmem>>, vector<1x8x256xf32>,
    return
  }
  func.func @transform_0(%arg0: i32, %arg1: i32) -> (i32, i32, i32) {
    %c0_i32 = arith.constant 0 : i32
    %c0_i32_0 = arith.constant 0 : i32
    return %arg0, %c0_i32, %arg1 : i32, i32, i32
  }
  func.func @transform_1(%arg0: i32, %arg1: i32) -> (i32, i32) {
    %c0_i32 = arith.constant 0 : i32
    %c0_i32_0 = arith.constant 0 : i32
    %c0_i32_1 = arith.constant 0 : i32
    return %c0_i32, %c0_i32_0 : i32, i32
  }
  func.func @transform_2(%arg0: i32, %arg1: i32) -> (i32, i32) {
    %c0_i32 = arith.constant 0 : i32
    %c0_i32_0 = arith.constant 0 : i32
    %c0_i32_1 = arith.constant 0 : i32
    return %c0_i32, %c0_i32_0 : i32, i32
  }
  func.func @transform_3(%arg0: i32, %arg1: i32) -> (i32, i32, i32) {
    %c0_i32 = arith.constant 0 : i32
    %c0_i32_0 = arith.constant 0 : i32
    return %arg0, %c0_i32, %arg1 : i32, i32, i32
  }
}

</mosaic_0001>

<llo_original>
// kernel: upsample_conv_layer.1
$region0: #{upsample_conv_layer.1}
  #allocation0 [shape = 'u32[]', space=smem, size = 0x4, offset = 0x4, fixed_abs, tag = 'smem constant byte address 0x4 - core index']
  #allocation1 [shape = 'u32[72,128]{1,0:T(1,128)}', space=vmem, size = 0x9000, scoped, tag = 'internal scratch']
  %s0 = inlined_call_operand.vmem [shape: bf16[2,36,256], index: 0, kind: input, shape index: {}]
  %s1 = inlined_call_operand.vmem [shape: bf16[8,36], index: 1, kind: input, shape index: {}]
  %s2 = inlined_call_operand.vmem [shape: f32[8,1], index: 2, kind: input, shape index: {}]
  %s3 = inlined_call_operand.vmem [shape: f32[2,8,256], index: 3, kind: output, shape index: {}]
  %s4 = sld [smem:[#allocation0]]
  $region45: #{upsample_conv_layer.1} parent=0
    _
  %s6 = ssub.s32 1, %s4
  %s7 = scalar_select 0, %s6, %s4
  loop: start=0, step=1, limit=4
  $region2: #{upsample_conv_layer.1} parent=0 // loop_pre_header
    _
  $region3: #{upsample_conv_layer.1} parent=0 // loop_header
    %s9 = sphi 0, %s13
    %p10 = scmp.ge.s32.totalorder %s9, 4
    %s16 = sphi 0, %s28
    %s17 = sphi 0, %s24
    %s18 = sphi 0, %s16
    %s19 = sphi 0, %s17
    %s20 = sphi 0, %s18
    %s21 = sphi 0, %s19
    %s33 = sphi 0, %s35
    %s36 = sphi 0, %s33
    %s37 = sphi 0, %s36
    %s53 = sphi 0, %s37
    %s57 = sphi 0, %s57
    %s59 = sphi 0, %s57
    %s60 = sphi 0, %s59
    %s74 = sphi 0, %s60
    %s78 = sphi 0, %s78
    %s80 = sphi 0, %s78
    %s81 = sphi 0, %s80
    %s95 = sphi 0, %s81
    %s103 = sphi 0, %s105
    %s106 = sphi 0, %s103
    %s107 = sphi 0, %s106
    %s123 = sphi 0, %s107
  $region4: #{upsample_conv_layer.1} parent=0 // loop_header_branch
    %12 = sbr.rel (%p10) target = $region8
  $region5: #{upsample_conv_layer.1} parent=0 // loop_body
    %s14 = ssub.s32 %s9, 1
    %s15 = ssub.s32 %s9, 2
    %s22 = sadd.s32 1, %s17
    %p23 = scmp.ge.s32.totalorder %s22, 1
    %s24 = scalar_select %p23, 0, %s22
    %s25 = sadd.s32 1, %s16
    %s26 = scalar_select %p23, %s25, %s16
    %p27 = scmp.ge.s32.totalorder %s26, 2
    %s28 = scalar_select %p27, 0, %s26
    %s29 = ssub.s32 %s16, %s28
    %s30 = ssub.s32 %s17, %s24
    %s31 = sor.u32 %s29, %s30
    %p32 = scmp.eq.s32.totalorder %s31, 0
    %s34 = sadd.s32 %s33, 1
    %s35 = scalar_select %p32, %s33, %s34
    %p38 = pneg %p32
    %p39 = scmp.eq.s32.totalorder %s9, 1
    %p40 = por %p38, %p39
    %p41 = scmp.ne.s32.totalorder %s33, %s36
    %p42 = scmp.eq.s32.totalorder %s9, 0
    %p43 = por %p41, %p42
    %p44 = scmp.ne.s32.totalorder %s33, %s36
    %p45 = scmp.eq.s32.totalorder %s14, 1
    %p46 = por %p44, %p45
    %p47 = scmp.ne.s32.totalorder %s36, %s37
    %p48 = scmp.eq.s32.totalorder %s14, 0
    %p49 = por %p47, %p48
    %p50 = scmp.ne.s32.totalorder %s36, %s37
    %p51 = scmp.eq.s32.totalorder %s15, 1
    %p52 = por %p50, %p51
    %p54 = scmp.ne.s32.totalorder %s37, %s53
    %p55 = scmp.eq.s32.totalorder %s15, 0
    %p56 = por %p54, %p55
    %s58 = sadd.s32 %s57, 1
    %p61 = scmp.eq.s32.totalorder %s9, 1
    %p62 = scmp.ne.s32.totalorder %s57, %s59
    %p63 = scmp.eq.s32.totalorder %s9, 0
    %p64 = por %p62, %p63
    %p65 = scmp.ne.s32.totalorder %s57, %s59
    %p66 = scmp.eq.s32.totalorder %s14, 1
    %p67 = por %p65, %p66
    %p68 = scmp.ne.s32.totalorder %s59, %s60
    %p69 = scmp.eq.s32.totalorder %s14, 0
    %p70 = por %p68, %p69
    %p71 = scmp.ne.s32.totalorder %s59, %s60
    %p72 = scmp.eq.s32.totalorder %s15, 1
    %p73 = por %p71, %p72
    %p75 = scmp.ne.s32.totalorder %s60, %s74
    %p76 = scmp.eq.s32.totalorder %s15, 0
    %p77 = por %p75, %p76
    %s79 = sadd.s32 %s78, 1
    %p82 = scmp.eq.s32.totalorder %s9, 1
    %p83 = scmp.ne.s32.totalorder %s78, %s80
    %p84 = scmp.eq.s32.totalorder %s9, 0
    %p85 = por %p83, %p84
    %p86 = scmp.ne.s32.totalorder %s78, %s80
    %p87 = scmp.eq.s32.totalorder %s14, 1
    %p88 = por %p86, %p87
    %p89 = scmp.ne.s32.totalorder %s80, %s81
    %p90 = scmp.eq.s32.totalorder %s14, 0
    %p91 = por %p89, %p90
    %p92 = scmp.ne.s32.totalorder %s80, %s81
    %p93 = scmp.eq.s32.totalorder %s15, 1
    %p94 = por %p92, %p93
    %p96 = scmp.ne.s32.totalorder %s81, %s95
    %p97 = scmp.eq.s32.totalorder %s15, 0
    %p98 = por %p96, %p97
    %s99 = ssub.s32 %s16, %s28
    %s100 = ssub.s32 %s17, %s24
    %s101 = sor.u32 %s99, %s100
    %p102 = scmp.eq.s32.totalorder %s101, 0
    %s104 = sadd.s32 %s103, 1
    %s105 = scalar_select %p102, %s103, %s104
    %p108 = pneg %p102
    %p109 = scmp.eq.s32.totalorder %s9, 1
    %p110 = por %p108, %p109
    %p111 = scmp.ne.s32.totalorder %s103, %s106
    %p112 = scmp.eq.s32.totalorder %s9, 0
    %p113 = por %p111, %p112
    %p114 = scmp.ne.s32.totalorder %s103, %s106
    %p115 = scmp.eq.s32.totalorder %s14, 1
    %p116 = por %p114, %p115
    %p117 = scmp.ne.s32.totalorder %s106, %s107
    %p118 = scmp.eq.s32.totalorder %s14, 0
    %p119 = por %p117, %p118
    %p120 = scmp.ne.s32.totalorder %s106, %s107
    %p121 = scmp.eq.s32.totalorder %s15, 1
    %p122 = por %p120, %p121
    %p124 = scmp.ne.s32.totalorder %s107, %s123
    %p125 = scmp.eq.s32.totalorder %s15, 0
    %p126 = por %p124, %p125
    %p127 = scmp.le.s32.totalorder 1, %s9
    %p128 = scmp.lt.s32.totalorder %s9, 3
    %p129 = pnand %p127, %p128
    %p130 = pneg %p129
    // Predicated region
    $region9: #{upsample_conv_layer.1} parent=5 // pred_check
      _
    $region10: #{upsample_conv_layer.1} parent=5 // pred_check_branch
      %132 = sbr.rel (%p129) target = $region12
    $region11: #{upsample_conv_layer.1} parent=5 // pred_region
      %s133 = ssub.s32 %s9, 1
      // Predicated region
      $region13: #{upsample_conv_layer.1} parent=11 // pred_check
        %p134 = pneg %p70
      $region14: #{upsample_conv_layer.1} parent=11 // pred_check_branch
        %136 = sbr.rel (%p134) target = $region16
      $region15: #{upsample_conv_layer.1} parent=11 // pred_region
        _
      $region16: #{upsample_conv_layer.1} parent=11 // pred_fallthru
        _
      // Predicated region
      $region17: #{upsample_conv_layer.1} parent=11 // pred_check
        %p137 = pneg %p91
      $region18: #{upsample_conv_layer.1} parent=11 // pred_check_branch
        %139 = sbr.rel (%p137) target = $region20
      $region19: #{upsample_conv_layer.1} parent=11 // pred_region
        _
      $region20: #{upsample_conv_layer.1} parent=11 // pred_fallthru
        _
    $region12: #{upsample_conv_layer.1} parent=5 // pred_fallthru
      _
    %p140 = scmp.lt.s32.totalorder %s9, 2
    // Predicated region
    $region21: #{upsample_conv_layer.1} parent=5 // pred_check
      %p141 = pneg %p140
    $region22: #{upsample_conv_layer.1} parent=5 // pred_check_branch
      %143 = sbr.rel (%p141) target = $region24
    $region23: #{upsample_conv_layer.1} parent=5 // pred_region
      // Predicated region
      $region25: #{upsample_conv_layer.1} parent=23 // pred_check
        %p144 = pneg %p43
      $region26: #{upsample_conv_layer.1} parent=23 // pred_check_branch
        %146 = sbr.rel (%p144) target = $region28
      $region27: #{upsample_conv_layer.1} parent=23 // pred_region
        %s147 = smul.u32 2, %s17
        %p148 = scmp.lt.s32.totalorder %s16, 1
        %s149 = scalar_select %p148, %s16, 1
        %p150 = scmp.lt.s32.totalorder %s147, 1
        %s151 = scalar_select %p150, %s147, 1
        %s152 = smul.addr %s149, 10
        %s153 = sadd.s32 %s151, %s152
        %s154 = smul.addr %s153, 4
        %s155 = scalar_lea.vmem %s0, %s154
        %s156 = smul.u32 2, %s17
      $region28: #{upsample_conv_layer.1} parent=23 // pred_fallthru
        _
    $region24: #{upsample_conv_layer.1} parent=5 // pred_fallthru
      _
    %p157 = scmp.le.s32.totalorder 1, %s9
    %p158 = scmp.lt.s32.totalorder %s9, 3
    %p159 = pnand %p157, %p158
    %p160 = pneg %p159
    // Predicated region
    $region29: #{upsample_conv_layer.1} parent=5 // pred_check
      _
    $region30: #{upsample_conv_layer.1} parent=5 // pred_check_branch
      %162 = sbr.rel (%p159) target = $region32
    $region31: #{upsample_conv_layer.1} parent=5 // pred_region
      %s163 = ssub.s32 %s9, 1
      %s164 = smul.u32 2, %s19
      %p165 = scmp.lt.s32.totalorder %s18, 1
      %s166 = scalar_select %p165, %s18, 1
      %p167 = scmp.lt.s32.totalorder %s164, 1
      %s168 = scalar_select %p167, %s164, 1
      %s169 = smul.addr %s166, 10
      %s170 = sadd.s32 %s168, %s169
      %s171 = smul.addr %s170, 4
      %s172 = scalar_lea.vmem %s0, %s171
      %p173 = pneg %p49
      %p174 = pneg %p46
      %p175 = pneg %p70
      %p176 = pneg %p67
      %p177 = pneg %p91
      %p178 = pneg %p88
      %p179 = pneg %p119
      %p180 = pneg %p116
      %s181 = smul.u32 2, %s19
      %p182 = scmp.lt.s32.totalorder %s18, 1
      %s183 = scalar_select %p182, %s18, 1
      %p184 = scmp.lt.s32.totalorder %s181, 1
      %s185 = scalar_select %p184, %s181, 1
      %s186 = smul.addr %s183, 2
      %s187 = sadd.s32 %s185, %s186
      %s188 = smul.addr %s187, 8
      %s189 = scalar_lea.vmem %s3, %s188
      %s190 = smul.u32 2, %s19
      %p191 = scmp.lt.s32.totalorder %s18, 1
      %s192 = scalar_select %p191, %s18, 1
      %p193 = scmp.lt.s32.totalorder %s190, 1
      %s194 = scalar_select %p193, %s190, 1
      %s195 = smul.addr %s192, 10
      %s196 = sadd.s32 %s194, %s195
      %s197 = smul.addr %s196, 4
      %s198 = scalar_lea.vmem %s0, %s197
      %s199 = smul.u32 2, %s19
      %s200 = smul.u32 2, %s19
      %p201 = scmp.lt.s32.totalorder %s18, 1
      %s202 = scalar_select %p201, %s18, 1
      %p203 = scmp.lt.s32.totalorder %s200, 1
      %s204 = scalar_select %p203, %s200, 1
      %s205 = smul.addr %s202, 2
      %s206 = sadd.s32 %s204, %s205
      %s207 = smul.addr %s206, 8
      %s208 = scalar_lea.vmem %s3, %s207
      %s209 = smul.u32 2, %s19
      %v211 = vld [vmem:[%s1] sm:$0xf]
      %v212 = vld [vmem:[%s198] sm:$0xff]
      %v213 = vld [vmem:[%s198 + $0x8] sm:$0xff]
      %v214 = vld [vmem:[%s198 + $0x10] sm:$0xff]
      %v215 = vld [vmem:[%s198 + $0x18] sm:$0xff]
      %v216 = vld [vmem:[%s198 + $0x20] sm:$0x33]
      %v217 = vld [vmem:[%s2] sm:$0xff]
      %219 = vset.pattern.permute.xlu0 0
      %220 = vperm.xlu0 %219, %v217
      %v221 = vpop.permute.xlu0 %220
      %v228 = vunpack.c.l.b16 %v212
      %v229 = vunpack.c.h.b16 %v212
      %v230 = vunpack.c.l.b16 %v213
      %v231 = vunpack.c.h.b16 %v213
      %v232 = vunpack.c.l.b16 %v214
      %v233 = vunpack.c.h.b16 %v214
      %v234 = vunpack.c.l.b16 %v215
      %v235 = vunpack.c.h.b16 %v215
      %v236 = vunpack.c.l.b16 %v216
      %v237 = vunpack.c.h.b16 %v216
      %v238 = vpack.c.b16 %v230, %v228
      %v239 = vpack.c.b16 %v231, %v229
      %v240 = vpack.c.b16 %v234, %v232
      %v241 = vpack.c.b16 %v235, %v233
      %v242 = vpack.c.b16 %v236, %v236
      %v243 = vpack.c.b16 %v237, %v237
      %vm248 = vcmask 293888
      %v250 = vsel %vm248, %v211, 0
      %vm252 = vcmask 1041408
      %v254 = vsel %vm252, %v242, 0
      %v257 = vsel %vm252, %v243, 0
      %259 = vmatpush.bf16.msra.mxu0 0
      %260 = vmatpush.bf16.msra.mxu0 0
      %261 = vmatpush.bf16.msra.mxu0 0
      %262 = vmatpush.bf16.msra.mxu0 0
      %263 = vmatpush.bf16.msra.mxu0 0
      %264 = vmatpush.bf16.msra.mxu0 %v254
      %265 = vmatpush.bf16.msra.mxu0 %v240
      %266 = vmatpush.bf16.msra.mxu0 %v238
      %267 = vmatmul.bf16.gmra.mxu0 %v250
      %v268 = vpop.f32.mrf.mxu0
      %v269 = vadd.f32 %v221, %v268
      %v270 = vpop.f32.mrf.mxu0
      %271 = vdwg.mxu0
      %272 = vmatpush.bf16.msra.mxu0 0
      %273 = vmatpush.bf16.msra.mxu0 0
      %274 = vmatpush.bf16.msra.mxu0 0
      %275 = vmatpush.bf16.msra.mxu0 0
      %276 = vmatpush.bf16.msra.mxu0 0
      %277 = vmatpush.bf16.msra.mxu0 %v257
      %278 = vmatpush.bf16.msra.mxu0 %v241
      %279 = vmatpush.bf16.msra.mxu0 %v239
      %280 = vmatmul.bf16.gmra.mxu0 %v250
      %v281 = vpop.f32.mrf.mxu0
      %v282 = vadd.f32 %v221, %v281
      %v283 = vpop.f32.mrf.mxu0
      %284 = vdwg.mxu0
      %285 = vst [vmem:[%s208] sm:$0xff] %v269
      %286 = vst [vmem:[%s208 + $0x8] sm:$0xff] %v282
      %s287 = smul.u32 2, %s19
      %p288 = scmp.lt.s32.totalorder %s18, 1
      %s289 = scalar_select %p288, %s18, 1
      %p290 = scmp.lt.s32.totalorder %s287, 1
      %s291 = scalar_select %p290, %s287, 1
      %s292 = smul.addr %s289, 2
      %s293 = sadd.s32 %s291, %s292
      %s294 = smul.addr %s293, 8
      %s295 = scalar_lea.vmem %s3, %s294
      // Predicated region
      $region33: #{upsample_conv_layer.1} parent=31 // pred_check
        %p296 = pneg %p116
      $region34: #{upsample_conv_layer.1} parent=31 // pred_check_branch
        %298 = sbr.rel (%p296) target = $region36
      $region35: #{upsample_conv_layer.1} parent=31 // pred_region
        %s299 = smul.u32 2, %s19
      $region36: #{upsample_conv_layer.1} parent=31 // pred_fallthru
        _
    $region32: #{upsample_conv_layer.1} parent=5 // pred_fallthru
      _
    %p300 = scmp.le.s32.totalorder 2, %s9
    // Predicated region
    $region37: #{upsample_conv_layer.1} parent=5 // pred_check
      %p301 = pneg %p300
    $region38: #{upsample_conv_layer.1} parent=5 // pred_check_branch
      %303 = sbr.rel (%p301) target = $region40
    $region39: #{upsample_conv_layer.1} parent=5 // pred_region
      %s304 = ssub.s32 %s9, 2
      // Predicated region
      $region41: #{upsample_conv_layer.1} parent=39 // pred_check
        %p305 = pneg %p122
      $region42: #{upsample_conv_layer.1} parent=39 // pred_check_branch
        %307 = sbr.rel (%p305) target = $region44
      $region43: #{upsample_conv_layer.1} parent=39 // pred_region
        %s308 = smul.u32 2, %s21
        %p309 = scmp.lt.s32.totalorder %s20, 1
        %s310 = scalar_select %p309, %s20, 1
        %p311 = scmp.lt.s32.totalorder %s308, 1
        %s312 = scalar_select %p311, %s308, 1
        %s313 = smul.addr %s310, 2
        %s314 = sadd.s32 %s312, %s313
        %s315 = smul.addr %s314, 8
        %s316 = scalar_lea.vmem %s3, %s315
      $region44: #{upsample_conv_layer.1} parent=39 // pred_fallthru
        _
    $region40: #{upsample_conv_layer.1} parent=5 // pred_fallthru
      _
  $region6: #{upsample_conv_layer.1} parent=0 // loop_footer
    %s13 = sadd.s32 1, %s9
  $region7: #{upsample_conv_layer.1} parent=0 // loop_footer_branch
    %8 = sbr.rel target = $region3
  $region8: #{upsample_conv_layer.1} parent=0 // loop_exit
    _

</llo_original>
